<compile_context>
chip_gen: v5e
topology: v5e:2x2
jax: 0.10.0
libtpu: 0.0.40
codegen_flags: <defaults>
</compile_context>

<pallas_src>
import jax
import jax.numpy as jnp
from jax.experimental import pallas as pl
from jax.experimental.pallas import tpu as pltpu

_LANE = 128
_SUBLANE = 8


def _round_up(x, m):
    return ((x + m - 1) // m) * m


def _default_block_batch():
    # TM=128 matches v5e's 4x128^2 MXU; TM=256 matches v6e/v7x's 2x256^2 MXU.
    try:
        kind = jax.devices()[0].device_kind.lower()
    except Exception:
        return 256
    if "v5 lite" in kind or "v5e" in kind or "v5lite" in kind:
        return 128
    return 256


def _sumchild_kernel(x_ref, u_ref, b_ref, o_ref):
    # x_ref: (TM, K)  u_ref: (K, Np)  b_ref: (1, Np)  o_ref: (TM, Np)
    acc = jnp.dot(x_ref[...], u_ref[...], preferred_element_type=jnp.float32)
    # bias broadcast over sublanes is a free VPU op hidden under the MXU.
    o_ref[...] = (acc + b_ref[...].astype(jnp.float32)).astype(o_ref.dtype)


def sumchild_forward(batched_in_el, U, b, *, block_batch=None, use_bf16_operands=False):
    """batched_in_el: (bs, n_ch, in_size); U: (max_deg*in_size, n_aggr*out_size);
    b: (1, n_aggr*out_size). Returns (bs, n_aggr*out_size)."""
    bs, n_ch, in_size = batched_in_el.shape
    K = n_ch * in_size
    N = U.shape[1]
    out_dtype = batched_in_el.dtype

    if block_batch is None:
        block_batch = _default_block_batch()

    # Lane-dense output: pad N up to a multiple of 128 with zero columns.
    # (In production the parameters should be stored pre-padded to avoid the
    #  per-call pad op; here it is done in the wrapper for self-containment.)
    Np = _round_up(N, _LANE)

    # Batch tile: full (sublane-rounded) batch when small, else block_batch.
    tm = min(block_batch, _round_up(bs, _SUBLANE))
    bs_pad = _round_up(bs, tm)

    x_flat = batched_in_el.reshape(bs, K)          # glue: view((bs, 1, -1)) equiv
    if bs_pad != bs:
        x_flat = jnp.pad(x_flat, ((0, bs_pad - bs), (0, 0)))

    U_in, b_in = U, b
    if Np != N:
        U_in = jnp.pad(U_in, ((0, 0), (0, Np - N)))
        b_in = jnp.pad(b_in, ((0, 0), (0, Np - N)))

    if K % _SUBLANE != 0:
        # U block second-to-last dim must be a multiple of 8 or the full dim;
        # fall back to a wrapper slice so the block equals the full array dims.
        U_in = U_in[:K]

    if use_bf16_operands:
        # Optional for v6e/v7x: bf16 MXU operands, f32 accumulate + bias-add.
        x_flat = x_flat.astype(jnp.bfloat16)
        U_in = U_in.astype(jnp.bfloat16)

    grid = (bs_pad // tm,)
    out = pl.pallas_call(
        _sumchild_kernel,
        out_shape=jax.ShapeDtypeStruct((bs_pad, Np), out_dtype),
        grid_spec=pltpu.PrefetchScalarGridSpec(
            num_scalar_prefetch=0,
            grid=grid,
            in_specs=[
                pl.BlockSpec((tm, K), lambda i: (i, 0)),     # batch tile, pipelined
                pl.BlockSpec((K, Np), lambda i: (0, 0)),     # only first K rows of U; resident
                pl.BlockSpec((1, Np), lambda i: (0, 0)),     # bias; resident
            ],
            out_specs=pl.BlockSpec((tm, Np), lambda i: (i, 0)),
        ),
        compiler_params=pltpu.CompilerParams(
            dimension_semantics=("parallel",)),
    )(x_flat, U_in, b_in)

    return out[:bs, :N]


def xavier_uniform(key, shape, dtype=jnp.float32):
    fan_in, fan_out = shape[0], shape[1]
    bound = (6.0 / (fan_in + fan_out)) ** 0.5
    return jax.random.uniform(key, shape, dtype=dtype, minval=-bound, maxval=bound)


if __name__ == "__main__":
    # Module hyperparameters (pos_stationarity=False, t_size=None).
    in_size = 32
    out_size = 32
    max_output_degree = 4
    n_aggr = 2

    # Example input: batch=8, n_children=3 (< max_output_degree to exercise U row window).
    bs = 8
    n_ch = 3

    key = jax.random.PRNGKey(0)
    k_x, k_u, k_b = jax.random.split(key, 3)

    batched_in_el = jax.random.normal(k_x, (bs, n_ch, in_size), dtype=jnp.float32)
    U = xavier_uniform(k_u, (max_output_degree * in_size, n_aggr * out_size))
    b = xavier_uniform(k_b, (1, n_aggr * out_size))
    # TODO(synk): pos_stationarity=True and t_size (type_embs @ U_type) branches
    # are not exercised here; the same matmul+bias kernel would cover them.

    out = sumchild_forward(batched_in_el, U, b)
    out = jax.block_until_ready(out)

    # Pure-JAX reference of the PyTorch semantics.
    ref = batched_in_el.reshape(bs, -1) @ U[: n_ch * in_size] + b
    assert out.shape == (bs, n_aggr * out_size)
    assert jnp.allclose(out, ref, atol=1e-5, rtol=1e-5)

    print("KERNEL_OK")
</pallas_src>

<mosaic_0001>
module attributes {stable_mosaic.version = 11 : i64} {
  func.func @_sumchild_kernel(%arg0: i32, %arg1: memref<8x96xf32, #tpu.memory_space<vmem>>, %arg2: memref<96x128xf32, #tpu.memory_space<vmem>>, %arg3: memref<1x128xf32, #tpu.memory_space<vmem>>, %arg4: memref<8x128xf32, #tpu.memory_space<vmem>>) attributes {dimension_semantics = [#tpu.dimension_semantics<parallel>], iteration_bounds = array<i64: 1>, scalar_prefetch = 0 : i64, scratch_operands = 0 : i64, tpu.core_type = #tpu.core_type<tc>, window_params = [{transform_indices = @transform_0, window_bounds = array<i64: 8, 96>}, {transform_indices = @transform_1, window_bounds = array<i64: 96, 128>}, {pipeline_mode = #tpu.pipeline_mode<synchronous>, transform_indices = @transform_2, window_bounds = array<i64: 1, 128>}, {transform_indices = @transform_3, window_bounds = array<i64: 8, 128>}]} {
    %c0 = arith.constant 0 : index
    %c0_0 = arith.constant 0 : index
    %0 = vector.load %arg1[%c0, %c0_0] : memref<8x96xf32, #tpu.memory_space<vmem>>, vector<8x96xf32>
    %c0_1 = arith.constant 0 : index
    %c0_2 = arith.constant 0 : index
    %1 = vector.load %arg2[%c0_1, %c0_2] : memref<96x128xf32, #tpu.memory_space<vmem>>, vector<96x128xf32>
    %cst = arith.constant dense<0.000000e+00> : vector<8x128xf32>
    %2 = tpu.matmul %0, %1, %cst {dimension_numbers = #tpu.dot_dimension_numbers<[1], [0], [0], [1], [0, 0, 1, 1], [], []>} : vector<8x96xf32>, vector<96x128xf32>, vector<8x128xf32> -> vector<8x128xf32>
    %c0_3 = arith.constant 0 : index
    %c0_4 = arith.constant 0 : index
    %3 = vector.load %arg3[%c0_3, %c0_4] : memref<1x128xf32, #tpu.memory_space<vmem>>, vector<1x128xf32>
    %4 = vector.broadcast %3 : vector<1x128xf32> to vector<8x128xf32>
    %5 = arith.addf %2, %4 : vector<8x128xf32>
    %c0_5 = arith.constant 0 : index
    %c0_6 = arith.constant 0 : index
    %6 = vector.load %arg4[%c0_5, %c0_6] : memref<8x128xf32, #tpu.memory_space<vmem>>, vector<8x128xf32>
    tpu.vector_store %arg4[%c0_5, %c0_6], %5 {strides = array<i32>} : memref<8x128xf32, #tpu.memory_space<vmem>>, vector<8x128xf32>,
    return
  }
  func.func @transform_0(%arg0: i32) -> (i32, i32) {
    %c0_i32 = arith.constant 0 : i32
    %c0_i32_0 = arith.constant 0 : i32
    return %arg0, %c0_i32 : i32, i32
  }
  func.func @transform_1(%arg0: i32) -> (i32, i32) {
    %c0_i32 = arith.constant 0 : i32
    %c0_i32_0 = arith.constant 0 : i32
    %c0_i32_1 = arith.constant 0 : i32
    return %c0_i32, %c0_i32_0 : i32, i32
  }
  func.func @transform_2(%arg0: i32) -> (i32, i32) {
    %c0_i32 = arith.constant 0 : i32
    %c0_i32_0 = arith.constant 0 : i32
    %c0_i32_1 = arith.constant 0 : i32
    return %c0_i32, %c0_i32_0 : i32, i32
  }
  func.func @transform_3(%arg0: i32) -> (i32, i32) {
    %c0_i32 = arith.constant 0 : i32
    %c0_i32_0 = arith.constant 0 : i32
    return %arg0, %c0_i32 : i32, i32
  }
}

</mosaic_0001>

<llo_original>
// kernel: tpu_custom_call.1
$region0: #{tpu_custom_call.1}
  #allocation0 [shape = 'u32[]', space=smem, size = 0x4, offset = 0x4, fixed_abs, tag = 'smem constant byte address 0x4 - core index']
  #allocation1 [shape = 'u32[72,128]{1,0:T(1,128)}', space=vmem, size = 0x9000, scoped, tag = 'internal scratch']
  %s0 = inlined_call_operand.hbm [shape: f32[8,96], index: 0, kind: input, shape index: {}]
  %s1 = inlined_call_operand.hbm [shape: f32[128,128], index: 1, kind: input, shape index: {}]
  %s2 = inlined_call_operand.vmem [shape: f32[1,128], index: 2, kind: input, shape index: {}]
  %s3 = inlined_call_operand.hbm [shape: f32[8,128], index: 3, kind: output, shape index: {}]
  %s4 = sld [smem:[#allocation0]]
  $region30: #{tpu_custom_call.1} parent=0
    _
  %s6 = ssub.s32 1, %s4
  %s7 = scalar_select 0, %s6, %s4
  $region1: #{tpu_custom_call.1} parent=0
    #allocation2 [shape = 'u8[4096]{0}', space=vmem, size = 0x1000, scoped, tag = 'input window, operand 0, single buffered']
    #allocation3 [shape = 's32[1]{0}', space=sflag, size = 0x4, scoped, tag = 'scoped memory for tpu_custom_call.1']
    #allocation4 [shape = 's32[1]{0}', space=sflag, size = 0x4, scoped, tag = 'scoped memory for tpu_custom_call.1']
    #allocation5 [shape = 'u8[49152]{0}', space=vmem, size = 0xc000, scoped, tag = 'input window, operand 1, single buffered']
    #allocation6 [shape = 's32[1]{0}', space=sflag, size = 0x4, scoped, tag = 'scoped memory for tpu_custom_call.1']
    #allocation7 [shape = 'u8[4096]{0}', space=vmem, size = 0x1000, scoped, tag = 'output window, operand 0, single buffered']
    %8 = vsyncpa [#allocation3], 0
    %9 = vsyncpa [#allocation6], 0
    %10 = vsyncpa [#allocation4], 0
    // Predicated region
    $region2: #{tpu_custom_call.1} parent=1 // pred_check
      _
    $region3: #{tpu_custom_call.1} parent=1 // pred_check_branch
      %12 = sbr.rel (0) target = $region5
    $region4: #{tpu_custom_call.1} parent=1 // pred_region
      %14 = vsyncadd [#allocation3], 0
      %s16 = sshll.u32 %s0, 4
      %s17 = int_to_ptr.hbm [resolvable:$true] %s16
      %s18 = sshll.u32 [#allocation2], 4
      %s19 = int_to_ptr.vmem [resolvable:$true] %s18
      %21 = dma.hbm_to_vmem [thread:$0]  %s17, 128, %s19, [#allocation3]
    $region5: #{tpu_custom_call.1} parent=1 // pred_fallthru
      _
    // Predicated region
    $region6: #{tpu_custom_call.1} parent=1 // pred_check
      _
    $region7: #{tpu_custom_call.1} parent=1 // pred_check_branch
      %23 = sbr.rel (0) target = $region9
    $region8: #{tpu_custom_call.1} parent=1 // pred_region
      %25 = vsyncadd [#allocation6], 0
      %s26 = sshll.u32 %s1, 4
      %s27 = int_to_ptr.hbm [resolvable:$true] %s26
      %s28 = sshll.u32 [#allocation5], 4
      %s29 = int_to_ptr.vmem [resolvable:$true] %s28
      %34 = dma.hbm_to_vmem [thread:$0]  %s27, 1536, %s29, [#allocation6], 128, 128, 8
    $region9: #{tpu_custom_call.1} parent=1 // pred_fallthru
      _
    // Predicated region
    $region10: #{tpu_custom_call.1} parent=1 // pred_check
      _
    $region11: #{tpu_custom_call.1} parent=1 // pred_check_branch
      %36 = sbr.rel (0) target = $region13
    $region12: #{tpu_custom_call.1} parent=1 // pred_region
      _
    $region13: #{tpu_custom_call.1} parent=1 // pred_fallthru
      _
    // Predicated region
    $region14: #{tpu_custom_call.1} parent=1 // pred_check
      _
    $region15: #{tpu_custom_call.1} parent=1 // pred_check_branch
      %38 = sbr.rel (0) target = $region17
    $region16: #{tpu_custom_call.1} parent=1 // pred_region
      %40 = dma.done [#allocation3], 128
    $region17: #{tpu_custom_call.1} parent=1 // pred_fallthru
      _
    // Predicated region
    $region18: #{tpu_custom_call.1} parent=1 // pred_check
      _
    $region19: #{tpu_custom_call.1} parent=1 // pred_check_branch
      %42 = sbr.rel (0) target = $region21
    $region20: #{tpu_custom_call.1} parent=1 // pred_region
      %44 = dma.done [#allocation6], 1536
    $region21: #{tpu_custom_call.1} parent=1 // pred_fallthru
      _
    %v45 = vld [vmem:[#allocation2] sm:$0xff]
    %v46 = vld [vmem:[#allocation5] sm:$0xff]
    %v47 = vld [vmem:[#allocation5 + $0x8] sm:$0xff]
    %v48 = vld [vmem:[#allocation5 + $0x10] sm:$0xff]
    %v49 = vld [vmem:[#allocation5 + $0x18] sm:$0xff]
    %v50 = vld [vmem:[#allocation5 + $0x20] sm:$0xff]
    %v51 = vld [vmem:[#allocation5 + $0x28] sm:$0xff]
    %v52 = vld [vmem:[#allocation5 + $0x30] sm:$0xff]
    %v53 = vld [vmem:[#allocation5 + $0x38] sm:$0xff]
    %v54 = vld [vmem:[#allocation5 + $0x40] sm:$0xff]
    %v55 = vld [vmem:[#allocation5 + $0x48] sm:$0xff]
    %v56 = vld [vmem:[#allocation5 + $0x50] sm:$0xff]
    %v57 = vld [vmem:[#allocation5 + $0x58] sm:$0xff]
    %v58 = vld [vmem:[%s2] sm:$0x1]
    %v60 = vperm.slane %v58, 0
    %vm62 = vcmask 785408
    %v64 = vsel %vm62, %v45, 0
    %66 = vmatpush.msra.mxu0 0.0
    %67 = vmatpush.msra.mxu0 0.0
    %68 = vmatpush.msra.mxu0 0.0
    %69 = vmatpush.msra.mxu0 0.0
    %70 = vmatpush.msra.mxu0 %v57
    %71 = vmatpush.msra.mxu0 %v56
    %72 = vmatpush.msra.mxu0 %v55
    %73 = vmatpush.msra.mxu0 %v54
    %74 = vmatpush.msra.mxu0 %v53
    %75 = vmatpush.msra.mxu0 %v52
    %76 = vmatpush.msra.mxu0 %v51
    %77 = vmatpush.msra.mxu0 %v50
    %78 = vmatpush.msra.mxu0 %v49
    %79 = vmatpush.msra.mxu0 %v48
    %80 = vmatpush.msra.mxu0 %v47
    %81 = vmatpush.msra.mxu0 %v46
    %82 = vmatmul.f32.gmra.mxu0 %v64
    %v83 = vpop.f32.mrf.mxu0
    %v84 = vadd.f32 %v60, %v83
    %85 = vdwg.mxu0
    %86 = vst [vmem:[#allocation7] sm:$0xff] %v84
    // Predicated region
    $region22: #{tpu_custom_call.1} parent=1 // pred_check
      _
    $region23: #{tpu_custom_call.1} parent=1 // pred_check_branch
      %88 = sbr.rel (0) target = $region25
    $region24: #{tpu_custom_call.1} parent=1 // pred_region
      %90 = vsyncadd [#allocation4], 0
      %s92 = sshll.u32 [#allocation7], 4
      %s93 = int_to_ptr.vmem [resolvable:$true] %s92
      %s94 = sshll.u32 %s3, 4
      %s95 = int_to_ptr.hbm [resolvable:$true] %s94
      %97 = dma.vmem_to_hbm [thread:$0]  %s93, 128, %s95, [#allocation4]
    $region25: #{tpu_custom_call.1} parent=1 // pred_fallthru
      _
    // Predicated region
    $region26: #{tpu_custom_call.1} parent=1 // pred_check
      _
    $region27: #{tpu_custom_call.1} parent=1 // pred_check_branch
      %99 = sbr.rel (0) target = $region29
    $region28: #{tpu_custom_call.1} parent=1 // pred_region
      %101 = dma.done [#allocation4], 128
    $region29: #{tpu_custom_call.1} parent=1 // pred_fallthru
      _
    %102 = vsyncpa [#allocation3], 1
    %103 = vsyncpa [#allocation6], 1
    %104 = vsyncpa [#allocation4], 1

</llo_original>
